<compile_context>
chip_gen: v6e
topology: v6e:2x2x1
jax: 0.10.0
libtpu: 0.0.40
codegen_flags: <defaults>
</compile_context>

<pallas_src>
import functools

import jax
import jax.numpy as jnp
from jax import lax
from jax.experimental import pallas as pl
from jax.experimental.pallas import tpu as pltpu

LANES = 128          # vreg lane width: last dim of every kernel tile
CHUNK_ROWS = 512     # in-block reduction chunk: 512x128 f32 = 256 KiB live temp
_MiB = 1024 * 1024


def _vmem_budget_bytes():
    """Rough per-generation VMEM budget (half of physical); safe fallback."""
    try:
        info = pltpu.get_tpu_info()
        phys = getattr(info, "vmem_capacity_bytes", None)
        if phys:
            return int(phys) // 2
    except Exception:
        pass
    return 32 * _MiB  # v7x floor (64 MiB physical / 2); conservative everywhere


def _pick_block_rows(rows, itemsize, q):
    """Row-block size: ~4 MiB/input/buffer, multiple of q, and >=2 blocks."""
    per_buffer = min(_vmem_budget_bytes() // 6, 4 * _MiB)
    max_rows = max(q, (per_buffer // (LANES * itemsize)) // q * q)
    if rows < 2 * q:
        return rows                       # single full-extent block: always legal
    half = (rows + 1) // 2
    half_q = ((half + q - 1) // q) * q    # round up to sublane quantum
    return min(max_rows, half_q)          # guarantees num_blocks >= 2


def _block_partial(x_ref, t_ref, n_rows):
    """sum |x - t| over the first n_rows rows, folded into one (8,128) f32 tile.

    n_rows is compile-time static.  Works in CHUNK_ROWS slices (bounded temp),
    then a static remainder (a multiple of 8 plus an optional sub-8-row tail).
    Pure VPU tile adds; no cross-lane reduction.
    """
    acc = jnp.zeros((8, LANES), jnp.float32)

    def absdiff(start, size):
        return jnp.abs(
            x_ref[pl.ds(start, size), :].astype(jnp.float32)
            - t_ref[pl.ds(start, size), :].astype(jnp.float32)
        )

    n_chunks = n_rows // CHUNK_ROWS
    if n_chunks > 0:
        def body(i, a):
            start = pl.multiple_of(i * CHUNK_ROWS, CHUNK_ROWS)
            d = absdiff(start, CHUNK_ROWS)
            return a + d.reshape(-1, 8, LANES).sum(axis=0)

        acc = lax.fori_loop(0, n_chunks, body, acc)

    base = n_chunks * CHUNK_ROWS          # static
    rem = n_rows - base                   # static, < CHUNK_ROWS
    rem8 = rem - rem % 8
    if rem8 > 0:
        d = absdiff(base, rem8)
        acc = acc + d.reshape(-1, 8, LANES).sum(axis=0)
    tail = rem - rem8                     # 0..7 rows
    if tail:
        d = absdiff(base + rem8, tail)
        acc = acc.at[:tail, :].add(d)
    return acc


def _mae_partial_kernel(x_ref, t_ref, out_ref, *, block_rows, last_rows):
    if last_rows == block_rows:
        # All blocks are full: no masking / branching at all.
        out_ref[0] = _block_partial(x_ref, t_ref, block_rows)
    else:
        i = pl.program_id(0)
        last = pl.num_programs(0) - 1

        @pl.when(i < last)
        def _():
            out_ref[0] = _block_partial(x_ref, t_ref, block_rows)

        @pl.when(i == last)
        def _():
            # Static slice of the valid rows, BEFORE any (-1,8,128) collapse.
            out_ref[0] = _block_partial(x_ref, t_ref, last_rows)


@functools.partial(jax.jit, static_argnames=("lambda_weight",))
def mae_loss(x, target, lambda_weight=1.0):
    assert x.shape == target.shape, "x and target must have the same shape"

    n = x.size
    xf = x.reshape(-1)
    tf = target.reshape(-1)

    itemsize = x.dtype.itemsize
    # Sublane quantum for legal BlockSpec row counts: f32 -> 8, bf16 -> 16, i8 -> 32.
    q = max(8, 32 // max(1, itemsize))

    rows = n // LANES

    if rows >= 8:
        main = rows * LANES
        if main == n:
            x2 = xf.reshape(rows, LANES)
            t2 = tf.reshape(rows, LANES)
        else:
            x2 = xf[:main].reshape(rows, LANES)
            t2 = tf[:main].reshape(rows, LANES)

        block_rows = _pick_block_rows(rows, itemsize, q)
        num_blocks = pl.cdiv(rows, block_rows)
        last_rows = rows - (num_blocks - 1) * block_rows

        kernel = functools.partial(
            _mae_partial_kernel, block_rows=block_rows, last_rows=last_rows
        )

        block_bytes = block_rows * LANES * itemsize
        # 2 inputs x 2 pipeline buffers + chunk temps / output / slack.
        vmem_limit = int(4 * block_bytes + 8 * _MiB)

        partials = pl.pallas_call(
            kernel,
            out_shape=jax.ShapeDtypeStruct((num_blocks, 8, LANES), jnp.float32),
            grid_spec=pltpu.PrefetchScalarGridSpec(
                num_scalar_prefetch=0,
                grid=(num_blocks,),
                in_specs=[
                    pl.BlockSpec((block_rows, LANES), lambda i: (i, 0)),
                    pl.BlockSpec((block_rows, LANES), lambda i: (i, 0)),
                ],
                out_specs=pl.BlockSpec((1, 8, LANES), lambda i: (i, 0, 0)),
            ),
            compiler_params=pltpu.CompilerParams(
                # Independent per-block partials -> megacore-shardable on v7x.
                dimension_semantics=("parallel",),
                vmem_limit_bytes=vmem_limit,
            ),
            cost_estimate=pl.CostEstimate(
                flops=3 * main,
                transcendentals=0,
                bytes_accessed=2 * main * itemsize + num_blocks * 8 * LANES * 4,
            ),
        )(x2, t2)

        total = jnp.sum(partials, dtype=jnp.float32)
        tail_start = main
    else:
        # Tiny input: fixed pallas_call cost would dominate; plain XLA is optimal.
        total = jnp.float32(0.0)
        tail_start = 0

    if tail_start < n:
        # Flat remainder (< 128 elements) and/or the tiny-input path.
        total = total + jnp.sum(
            jnp.abs(
                xf[tail_start:].astype(jnp.float32)
                - tf[tail_start:].astype(jnp.float32)
            )
        )

    mean_abs = total / jnp.float32(n)
    return jnp.float32(lambda_weight) * mean_abs


def _check(key, shape, lambda_weight):
    kx, kt = jax.random.split(key)
    x = jax.random.normal(kx, shape, dtype=jnp.float32)
    t = jax.random.normal(kt, shape, dtype=jnp.float32)
    loss = jax.block_until_ready(mae_loss(x, t, lambda_weight=lambda_weight))
    ref = lambda_weight * jnp.mean(jnp.abs(x - t))
    assert jnp.allclose(loss, ref, rtol=1e-5, atol=1e-6), (shape, loss, ref)


if __name__ == "__main__":
    key = jax.random.PRNGKey(0)

    # Primary shape from the module spec: b=2, c=4, h=16, w=16 (2 full blocks).
    _check(key, (2, 4, 16, 16), 1.0)

    # Masked trailing block (rows=75 -> blocks of 40, last block 35 rows).
    _check(jax.random.fold_in(key, 1), (2, 3, 40, 40), 0.5)
    # Two equal large-ish blocks (rows=1536).
    _check(jax.random.fold_in(key, 2), (2, 8, 96, 128), 2.0)
    # Kernel main part + <128-element flat tail handled in the wrapper.
    _check(jax.random.fold_in(key, 3), (2, 3, 17, 17), 1.0)
    # Tiny input (rows < 8): pure-XLA fallback path.
    _check(jax.random.fold_in(key, 4), (2, 3, 5, 7), 1.0)
    # Larger tensor exercising the chunked fori_loop and max block size.
    _check(jax.random.fold_in(key, 5), (8, 16, 128, 128), 1.0)

    print("KERNEL_OK")
</pallas_src>

<mosaic_0001>
module attributes {stable_mosaic.version = 11 : i64} {
  func.func @_mae_partial_kernel(%arg0: i32, %arg1: memref<8x128xf32, #tpu.memory_space<vmem>>, %arg2: memref<8x128xf32, #tpu.memory_space<vmem>>, %arg3: memref<1x8x128xf32, #tpu.memory_space<vmem>>) attributes {dimension_semantics = [#tpu.dimension_semantics<parallel>], iteration_bounds = array<i64: 2>, scalar_prefetch = 0 : i64, scratch_operands = 0 : i64, tpu.core_type = #tpu.core_type<tc>, window_params = [{transform_indices = @transform_0, window_bounds = array<i64: 8, 128>}, {transform_indices = @transform_1, window_bounds = array<i64: 8, 128>}, {transform_indices = @transform_2, window_bounds = array<i64: 1, 8, 128>}]} {
    %cst = arith.constant 0.000000e+00 : f32
    %0 = vector.broadcast %cst : f32 to vector<8x128xf32>
    %c0 = arith.constant 0 : index
    %c0_0 = arith.constant 0 : index
    %1 = vector.load %arg1[%c0, %c0_0] : memref<8x128xf32, #tpu.memory_space<vmem>>, vector<8x128xf32>
    %c0_1 = arith.constant 0 : index
    %c0_2 = arith.constant 0 : index
    %2 = vector.load %arg2[%c0_1, %c0_2] : memref<8x128xf32, #tpu.memory_space<vmem>>, vector<8x128xf32>
    %3 = arith.subf %1, %2 : vector<8x128xf32>
    %4 = math.absf %3 : vector<8x128xf32>
    %5 = vector.shape_cast %4 : vector<8x128xf32> to vector<1x8x128xf32>
    %cst_3 = arith.constant dense<0.000000e+00> : vector<8x128xf32>
    %6 = vector.multi_reduction <add>, %5, %cst_3 [0] : vector<1x8x128xf32> to vector<8x128xf32>
    %7 = arith.addf %0, %6 : vector<8x128xf32>
    %c0_4 = arith.constant 0 : index
    %c0_5 = arith.constant 0 : index
    %c0_6 = arith.constant 0 : index
    %8 = vector.load %arg3[%c0_4, %c0_5, %c0_6] : memref<1x8x128xf32, #tpu.memory_space<vmem>>, vector<1x8x128xf32>
    %9 = vector.shape_cast %8 : vector<1x8x128xf32> to vector<8x128xf32>
    %10 = vector.shape_cast %7 : vector<8x128xf32> to vector<1x8x128xf32>
    tpu.vector_store %arg3[%c0_4, %c0_5, %c0_6], %10 {strides = array<i32>} : memref<1x8x128xf32, #tpu.memory_space<vmem>>, vector<1x8x128xf32>,
    return
  }
  func.func @transform_0(%arg0: i32) -> (i32, i32) {
    %c0_i32 = arith.constant 0 : i32
    %c0_i32_0 = arith.constant 0 : i32
    return %arg0, %c0_i32 : i32, i32
  }
  func.func @transform_1(%arg0: i32) -> (i32, i32) {
    %c0_i32 = arith.constant 0 : i32
    %c0_i32_0 = arith.constant 0 : i32
    return %arg0, %c0_i32 : i32, i32
  }
  func.func @transform_2(%arg0: i32) -> (i32, i32, i32) {
    %c0_i32 = arith.constant 0 : i32
    %c0_i32_0 = arith.constant 0 : i32
    %c0_i32_1 = arith.constant 0 : i32
    return %arg0, %c0_i32, %c0_i32_0 : i32, i32, i32
  }
}

</mosaic_0001>

<llo_original>
// kernel: mae_loss.1
$region0: #{mae_loss.1}
  #allocation0 [shape = 'u32[]', space=smem, size = 0x4, offset = 0x4, fixed_abs, tag = 'smem constant byte address 0x4 - core index']
  #allocation1 [shape = 'u32[144,128]{1,0:T(1,128)}', space=vmem, size = 0x12000, scoped, tag = 'internal scratch']
  %s0 = inlined_call_operand.vmem [shape: f32[16,128], index: 0, kind: input, shape index: {}]
  %s1 = inlined_call_operand.vmem [shape: f32[16,128], index: 1, kind: input, shape index: {}]
  %s2 = inlined_call_operand.vmem [shape: f32[2,8,128], index: 2, kind: output, shape index: {}]
  %s3 = sld [smem:[#allocation0]]
  $region41: #{mae_loss.1} parent=0
    _
  %s5 = ssub.s32 1, %s3
  %s6 = scalar_select 0, %s5, %s3
  loop: start=0, step=1, limit=4
  $region2: #{mae_loss.1} parent=0 // loop_pre_header
    _
  $region3: #{mae_loss.1} parent=0 // loop_header
    %s8 = sphi 0, %s12
    %p9 = scmp.ge.s32.totalorder %s8, 4
    %s18 = sphi 0, %s20
    %s21 = sphi 0, %s18
    %s22 = sphi 0, %s21
    %s38 = sphi 0, %s22
    %s44 = sphi 0, %s46
    %s47 = sphi 0, %s44
    %s48 = sphi 0, %s47
    %s64 = sphi 0, %s48
    %s70 = sphi 0, %s72
    %s73 = sphi 0, %s70
    %s74 = sphi 0, %s73
    %s90 = sphi 0, %s74
  $region4: #{mae_loss.1} parent=0 // loop_header_branch
    %11 = sbr.rel (%p9) target = $region8
  $region5: #{mae_loss.1} parent=0 // loop_body
    %s13 = ssub.s32 %s8, 1
    %s14 = ssub.s32 %s8, 2
    %s15 = sadd.s32 %s8, 1
    %s16 = ssub.s32 %s8, %s15
    %p17 = scmp.eq.s32.totalorder %s16, 0
    %s19 = sadd.s32 %s18, 1
    %s20 = scalar_select %p17, %s18, %s19
    %p23 = pneg %p17
    %p24 = scmp.eq.s32.totalorder %s8, 1
    %p25 = por %p23, %p24
    %p26 = scmp.ne.s32.totalorder %s18, %s21
    %p27 = scmp.eq.s32.totalorder %s8, 0
    %p28 = por %p26, %p27
    %p29 = scmp.ne.s32.totalorder %s18, %s21
    %p30 = scmp.eq.s32.totalorder %s13, 1
    %p31 = por %p29, %p30
    %p32 = scmp.ne.s32.totalorder %s21, %s22
    %p33 = scmp.eq.s32.totalorder %s13, 0
    %p34 = por %p32, %p33
    %p35 = scmp.ne.s32.totalorder %s21, %s22
    %p36 = scmp.eq.s32.totalorder %s14, 1
    %p37 = por %p35, %p36
    %p39 = scmp.ne.s32.totalorder %s22, %s38
    %p40 = scmp.eq.s32.totalorder %s14, 0
    %p41 = por %p39, %p40
    %s42 = ssub.s32 %s8, %s15
    %p43 = scmp.eq.s32.totalorder %s42, 0
    %s45 = sadd.s32 %s44, 1
    %s46 = scalar_select %p43, %s44, %s45
    %p49 = pneg %p43
    %p50 = scmp.eq.s32.totalorder %s8, 1
    %p51 = por %p49, %p50
    %p52 = scmp.ne.s32.totalorder %s44, %s47
    %p53 = scmp.eq.s32.totalorder %s8, 0
    %p54 = por %p52, %p53
    %p55 = scmp.ne.s32.totalorder %s44, %s47
    %p56 = scmp.eq.s32.totalorder %s13, 1
    %p57 = por %p55, %p56
    %p58 = scmp.ne.s32.totalorder %s47, %s48
    %p59 = scmp.eq.s32.totalorder %s13, 0
    %p60 = por %p58, %p59
    %p61 = scmp.ne.s32.totalorder %s47, %s48
    %p62 = scmp.eq.s32.totalorder %s14, 1
    %p63 = por %p61, %p62
    %p65 = scmp.ne.s32.totalorder %s48, %s64
    %p66 = scmp.eq.s32.totalorder %s14, 0
    %p67 = por %p65, %p66
    %s68 = ssub.s32 %s8, %s15
    %p69 = scmp.eq.s32.totalorder %s68, 0
    %s71 = sadd.s32 %s70, 1
    %s72 = scalar_select %p69, %s70, %s71
    %p75 = pneg %p69
    %p76 = scmp.eq.s32.totalorder %s8, 1
    %p77 = por %p75, %p76
    %p78 = scmp.ne.s32.totalorder %s70, %s73
    %p79 = scmp.eq.s32.totalorder %s8, 0
    %p80 = por %p78, %p79
    %p81 = scmp.ne.s32.totalorder %s70, %s73
    %p82 = scmp.eq.s32.totalorder %s13, 1
    %p83 = por %p81, %p82
    %p84 = scmp.ne.s32.totalorder %s73, %s74
    %p85 = scmp.eq.s32.totalorder %s13, 0
    %p86 = por %p84, %p85
    %p87 = scmp.ne.s32.totalorder %s73, %s74
    %p88 = scmp.eq.s32.totalorder %s14, 1
    %p89 = por %p87, %p88
    %p91 = scmp.ne.s32.totalorder %s74, %s90
    %p92 = scmp.eq.s32.totalorder %s14, 0
    %p93 = por %p91, %p92
    %p94 = scmp.le.s32.totalorder 1, %s8
    %p95 = scmp.lt.s32.totalorder %s8, 3
    %p96 = pnand %p94, %p95
    %p97 = pneg %p96
    // Predicated region
    $region9: #{mae_loss.1} parent=5 // pred_check
      _
    $region10: #{mae_loss.1} parent=5 // pred_check_branch
      %99 = sbr.rel (%p96) target = $region12
    $region11: #{mae_loss.1} parent=5 // pred_region
      %s100 = ssub.s32 %s8, 1
    $region12: #{mae_loss.1} parent=5 // pred_fallthru
      _
    %p101 = scmp.lt.s32.totalorder %s8, 2
    // Predicated region
    $region13: #{mae_loss.1} parent=5 // pred_check
      %p102 = pneg %p101
    $region14: #{mae_loss.1} parent=5 // pred_check_branch
      %104 = sbr.rel (%p102) target = $region16
    $region15: #{mae_loss.1} parent=5 // pred_region
      // Predicated region
      $region17: #{mae_loss.1} parent=15 // pred_check
        %p105 = pneg %p28
      $region18: #{mae_loss.1} parent=15 // pred_check_branch
        %107 = sbr.rel (%p105) target = $region20
      $region19: #{mae_loss.1} parent=15 // pred_region
        %p108 = scmp.lt.s32.totalorder %s8, 1
        %s109 = scalar_select %p108, %s8, 1
        %s110 = smul.addr %s109, 8
        %s111 = scalar_lea.vmem %s0, %s110
      $region20: #{mae_loss.1} parent=15 // pred_fallthru
        _
      // Predicated region
      $region21: #{mae_loss.1} parent=15 // pred_check
        %p112 = pneg %p54
      $region22: #{mae_loss.1} parent=15 // pred_check_branch
        %114 = sbr.rel (%p112) target = $region24
      $region23: #{mae_loss.1} parent=15 // pred_region
        %p115 = scmp.lt.s32.totalorder %s8, 1
        %s116 = scalar_select %p115, %s8, 1
        %s117 = smul.addr %s116, 8
        %s118 = scalar_lea.vmem %s1, %s117
      $region24: #{mae_loss.1} parent=15 // pred_fallthru
        _
    $region16: #{mae_loss.1} parent=5 // pred_fallthru
      _
    %p119 = scmp.le.s32.totalorder 1, %s8
    %p120 = scmp.lt.s32.totalorder %s8, 3
    %p121 = pnand %p119, %p120
    %p122 = pneg %p121
    // Predicated region
    $region25: #{mae_loss.1} parent=5 // pred_check
      _
    $region26: #{mae_loss.1} parent=5 // pred_check_branch
      %124 = sbr.rel (%p121) target = $region28
    $region27: #{mae_loss.1} parent=5 // pred_region
      %s125 = ssub.s32 %s8, 1
      %p126 = scmp.lt.s32.totalorder %s13, 1
      %s127 = scalar_select %p126, %s13, 1
      %s128 = smul.addr %s127, 8
      %s129 = scalar_lea.vmem %s0, %s128
      %p130 = pneg %p34
      %p131 = pneg %p31
      %p132 = scmp.lt.s32.totalorder %s13, 1
      %s133 = scalar_select %p132, %s13, 1
      %s134 = smul.addr %s133, 8
      %s135 = scalar_lea.vmem %s1, %s134
      %p136 = pneg %p60
      %p137 = pneg %p57
      %p138 = pneg %p86
      %p139 = pneg %p83
      %p140 = scmp.lt.s32.totalorder %s13, 1
      %s141 = scalar_select %p140, %s13, 1
      %s142 = smul.addr %s141, 8
      %s143 = scalar_lea.vmem %s2, %s142
      %p144 = scmp.lt.s32.totalorder %s13, 1
      %s145 = scalar_select %p144, %s13, 1
      %s146 = smul.addr %s145, 8
      %s147 = scalar_lea.vmem %s0, %s146
      %p148 = scmp.lt.s32.totalorder %s13, 1
      %s149 = scalar_select %p148, %s13, 1
      %s150 = smul.addr %s149, 8
      %s151 = scalar_lea.vmem %s1, %s150
      %p152 = scmp.lt.s32.totalorder %s13, 1
      %s153 = scalar_select %p152, %s13, 1
      %s154 = smul.addr %s153, 8
      %s155 = scalar_lea.vmem %s2, %s154
      %v156 = vld [vmem:[%s147] sm:$0xff]
      %v157 = vld [vmem:[%s151] sm:$0xff]
      %v158 = vsub.f32 %v156, %v157
      %v159 = vand.u32 2147483647, %v158
      %v160 = vadd.f32 %v159, 0.0
      %v161 = vadd.f32 %v160, 0.0
      %162 = vst [vmem:[%s155] sm:$0xff] %v161
      %p163 = scmp.lt.s32.totalorder %s13, 1
      %s164 = scalar_select %p163, %s13, 1
      %s165 = smul.addr %s164, 8
      %s166 = scalar_lea.vmem %s2, %s165
      // Predicated region
      $region29: #{mae_loss.1} parent=27 // pred_check
        %p167 = pneg %p83
      $region30: #{mae_loss.1} parent=27 // pred_check_branch
        %169 = sbr.rel (%p167) target = $region32
      $region31: #{mae_loss.1} parent=27 // pred_region
        _
      $region32: #{mae_loss.1} parent=27 // pred_fallthru
        _
    $region28: #{mae_loss.1} parent=5 // pred_fallthru
      _
    %p170 = scmp.le.s32.totalorder 2, %s8
    // Predicated region
    $region33: #{mae_loss.1} parent=5 // pred_check
      %p171 = pneg %p170
    $region34: #{mae_loss.1} parent=5 // pred_check_branch
      %173 = sbr.rel (%p171) target = $region36
    $region35: #{mae_loss.1} parent=5 // pred_region
      %s174 = ssub.s32 %s8, 2
      // Predicated region
      $region37: #{mae_loss.1} parent=35 // pred_check
        %p175 = pneg %p89
      $region38: #{mae_loss.1} parent=35 // pred_check_branch
        %177 = sbr.rel (%p175) target = $region40
      $region39: #{mae_loss.1} parent=35 // pred_region
        %p178 = scmp.lt.s32.totalorder %s14, 1
        %s179 = scalar_select %p178, %s14, 1
        %s180 = smul.addr %s179, 8
        %s181 = scalar_lea.vmem %s2, %s180
      $region40: #{mae_loss.1} parent=35 // pred_fallthru
        _
    $region36: #{mae_loss.1} parent=5 // pred_fallthru
      _
  $region6: #{mae_loss.1} parent=0 // loop_footer
    %s12 = sadd.s32 1, %s8
  $region7: #{mae_loss.1} parent=0 // loop_footer_branch
    %7 = sbr.rel target = $region3
  $region8: #{mae_loss.1} parent=0 // loop_exit
    _

</llo_original>
